<compile_context>
chip_gen: v7x
topology: tpu7x:2x2x1
jax: 0.10.0
libtpu: 0.0.40
codegen_flags: <defaults>
</compile_context>

<pallas_src>
import functools

import jax
import jax.numpy as jnp
from jax import lax
from jax.experimental import pallas as pl
from jax.experimental.pallas import tpu as pltpu


def _round_up(n, m):
    return -(-n // m) * m


def _pick_tile_b(batch):
    """>=2 grid steps when the batch allows it (v7x megacore), sublane-aligned."""
    half = -(-batch // 2)
    return max(8, min(128, _round_up(half, 8)))


def _recognizer_kernel(patch_ref, wblk_ref, bc_ref, wa_ref, ba_ref,
                       wl_ref, bl_ref, out_ref, *, batch_tile, pool_pp):
    # ---- conv as ONE block-diagonal matmul (bf16 operands, f32 accumulate) ----
    # patch_ref: (PP*tile_b, QKK_pad) bf16, rows ordered pp*tile_b + b
    conv = jnp.dot(patch_ref[...], wblk_ref[...],
                   preferred_element_type=jnp.float32)        # (PP*tile_b, dim_p)

    # ---- max-pool over pp: contiguous sublane slices, pure VPU, no relayout ----
    pooled = conv[0:batch_tile]
    for pp in range(1, pool_pp):
        pooled = jnp.maximum(pooled, conv[pp * batch_tile:(pp + 1) * batch_tile])

    # bias + ReLU after the pool (commutes with a per-lane max) -> PPx cheaper
    pooled = jnp.maximum(pooled + bc_ref[...], 0.0)           # (tile_b, dim_p) f32

    # ---- affine (single 256x256-aligned matmul) + ReLU ----
    h = jnp.dot(pooled.astype(jnp.bfloat16), wa_ref[...],
                preferred_element_type=jnp.float32) + ba_ref[...]
    h = jnp.maximum(h, 0.0)                                   # (tile_b, dim_p)

    # ---- logits: lane-dense 128-wide output block ----
    logits = jnp.dot(h.astype(jnp.bfloat16), wl_ref[...],
                     preferred_element_type=jnp.float32) + bl_ref[...]
    out_ref[...] = logits.astype(out_ref.dtype)


def prepare_params(params, *, image_size, num_labels, kernel_size, channels,
                   pooling_kernel_size, stride):
    """One-time weight re-layout (hoist out of the per-forward path)."""
    K, P, C = kernel_size, pooling_kernel_size, channels
    conv_out = (image_size - K) // stride + 1
    pool_out = (conv_out - P) // P + 1
    Q, KK, PP = pool_out * pool_out, K * K, P * P
    dim = Q * C
    dim_p = _round_up(dim, 128)            # 196 -> 256
    qkk_p = _round_up(Q * KK, 128)         # 441 -> 512
    lbl_p = _round_up(num_labels, 128)     # 10  -> 128

    w_conv, b_conv, w_aff, b_aff, w_log, b_log = params

    # conv weight, block-diagonal: [q*KK+kk, q*C+c] = wc[kk, c]
    wc = w_conv.reshape(C, KK).T.astype(jnp.float32)                     # (KK, C)
    wblk = jnp.kron(jnp.eye(Q, dtype=jnp.float32), wc)                   # (Q*KK, dim)
    wblk = jnp.pad(wblk, ((0, qkk_p - Q * KK),
                          (0, dim_p - dim))).astype(jnp.bfloat16)
    # conv bias, lane q*C+c -> b_conv[c] (kept f32: added to f32 accumulator)
    bc = jnp.pad(jnp.tile(b_conv.astype(jnp.float32), Q),
                 (0, dim_p - dim)).reshape(1, dim_p)
    # affine weight permuted: rows indexed by q*C+c (pooled layout),
    # reproducing PyTorch's channel-major flatten order c*Q+q.
    wa = (w_aff.reshape(dim, C, Q).transpose(2, 1, 0)
          .reshape(dim, dim).astype(jnp.float32))
    wa = jnp.pad(wa, ((0, dim_p - dim), (0, dim_p - dim))).astype(jnp.bfloat16)
    ba = jnp.pad(b_aff.astype(jnp.float32), (0, dim_p - dim)).reshape(1, dim_p)
    # logits weight / bias, lane-padded to 128
    wl = jnp.pad(w_log.T.astype(jnp.float32),
                 ((0, dim_p - dim), (0, lbl_p - num_labels))).astype(jnp.bfloat16)
    bl = jnp.pad(b_log.astype(jnp.float32),
                 (0, lbl_p - num_labels)).reshape(1, lbl_p)

    meta = dict(K=K, P=P, C=C, stride=stride, conv_out=conv_out,
                pool_out=pool_out, Q=Q, KK=KK, PP=PP, dim=dim,
                dim_p=dim_p, qkk_p=qkk_p, lbl_p=lbl_p, num_labels=num_labels)
    return (wblk, bc, wa, ba, wl, bl), meta


def character_recognizer_forward(x, prepped, meta, *, batch_tile=None):
    B = x.shape[0]
    K, P, stride = meta["K"], meta["P"], meta["stride"]
    conv_out, pool_out = meta["conv_out"], meta["pool_out"]
    Q, KK, PP = meta["Q"], meta["KK"], meta["PP"]
    dim_p, qkk_p, lbl_p = meta["dim_p"], meta["qkk_p"], meta["lbl_p"]
    num_labels = meta["num_labels"]
    wblk, bc, wa, ba, wl, bl = prepped

    # ------------- glue: im2col via static strided slices -------------
    # TODO(synk): move into the kernel; the wrapper ships ~7x the raw image
    #             bytes and does a 6-D transpose on the critical path.
    xf = x.astype(jnp.float32)
    cols = []
    for ki in range(K):
        for kj in range(K):
            cols.append(xf[:, ki:ki + stride * conv_out:stride,
                            kj:kj + stride * conv_out:stride])
    pat = jnp.stack(cols, axis=-1)                       # (B, co, co, KK)
    pat = pat[:, :pool_out * P, :pool_out * P]           # region covered by pool
    pat = pat.reshape(B, pool_out, P, pool_out, P, KK)
    pat = pat.transpose(0, 2, 4, 1, 3, 5)                # (B, pi, pj, qi, qj, kk)
    pat = pat.reshape(B, PP, Q * KK).astype(jnp.bfloat16)
    pat = jnp.pad(pat, ((0, 0), (0, 0), (0, qkk_p - Q * KK)))

    # ------------- batch tiling, pp-major row order within each tile ---------
    tile_b = batch_tile if batch_tile is not None else _pick_tile_b(B)
    n_tiles = -(-B // tile_b)
    b_pad = n_tiles * tile_b
    if b_pad != B:
        pat = jnp.pad(pat, ((0, b_pad - B), (0, 0), (0, 0)))
    patches = (pat.reshape(n_tiles, tile_b, PP, qkk_p)
                  .transpose(0, 2, 1, 3)                 # rows: (tile, pp, b)
                  .reshape(n_tiles * PP * tile_b, qkk_p))

    # ------------- VMEM budget (keeps v5e 16MiB scoped / v7x 64MiB safe) -----
    est = (2 * tile_b * PP * qkk_p * 2                       # patches, dbl-buf bf16
           + 2 * (qkk_p * dim_p + dim_p * dim_p + dim_p * lbl_p) * 2   # weights
           + 2 * (2 * dim_p + lbl_p) * 4                     # biases (f32)
           + 2 * tile_b * lbl_p * 4                          # output, dbl-buf
           + (PP + 4) * tile_b * dim_p * 4)                  # in-kernel f32 temps
    vmem_limit = int(min(64 * 1024 * 1024, max(16 * 1024 * 1024, 4 * est)))

    kernel = functools.partial(_recognizer_kernel,
                               batch_tile=tile_b, pool_pp=PP)
    out = pl.pallas_call(
        kernel,
        out_shape=jax.ShapeDtypeStruct((b_pad, lbl_p), jnp.float32),
        grid=(n_tiles,),
        in_specs=[
            pl.BlockSpec((tile_b * PP, qkk_p), lambda i: (i, 0)),
            pl.BlockSpec((qkk_p, dim_p), lambda i: (0, 0)),
            pl.BlockSpec((1, dim_p), lambda i: (0, 0)),
            pl.BlockSpec((dim_p, dim_p), lambda i: (0, 0)),
            pl.BlockSpec((1, dim_p), lambda i: (0, 0)),
            pl.BlockSpec((dim_p, lbl_p), lambda i: (0, 0)),
            pl.BlockSpec((1, lbl_p), lambda i: (0, 0)),
        ],
        out_specs=pl.BlockSpec((tile_b, lbl_p), lambda i: (i, 0)),
        compiler_params=pltpu.CompilerParams(
            dimension_semantics=("parallel",),
            vmem_limit_bytes=vmem_limit),
    )(patches, wblk, bc, wa, ba, wl, bl)
    return out[:B, :num_labels]                           # (B, num_labels)


def reference_forward(x, params, *, kernel_size, channels,
                      pooling_kernel_size, stride, num_labels):
    """Plain-JAX mirror of the PyTorch forward (NCHW)."""
    w_conv, b_conv, w_aff, b_aff, w_log, b_log = params
    x4 = x[:, None, :, :]
    conv = lax.conv_general_dilated(
        x4, w_conv, window_strides=(stride, stride), padding="VALID",
        dimension_numbers=("NCHW", "OIHW", "NCHW"),
        precision=lax.Precision.HIGHEST)
    conv = jnp.maximum(conv + b_conv[None, :, None, None], 0.0)
    p = pooling_kernel_size
    pooled = lax.reduce_window(conv, -jnp.inf, lax.max,
                               window_dimensions=(1, 1, p, p),
                               window_strides=(1, 1, p, p),
                               padding="VALID")
    flat = pooled.reshape(pooled.shape[0], -1)
    h = jnp.maximum(jnp.dot(flat, w_aff.T, precision=lax.Precision.HIGHEST)
                    + b_aff, 0.0)
    return jnp.dot(h, w_log.T, precision=lax.Precision.HIGHEST) + b_log


if __name__ == "__main__":
    image_size, num_labels = 16, 10
    kernel_size, channels = 3, 4
    pooling_kernel_size, stride = 2, 1
    batch = 2

    conv_out = (image_size - kernel_size) // stride + 1                     # 14
    pool_out = (conv_out - pooling_kernel_size) // pooling_kernel_size + 1   # 7
    dim = pool_out * pool_out * channels                                     # 196

    key = jax.random.PRNGKey(0)
    ks = jax.random.split(key, 7)

    def _unif(k, shape, fan_in):
        bound = 1.0 / jnp.sqrt(fan_in)
        return jax.random.uniform(k, shape, jnp.float32, -bound, bound)

    w_conv = _unif(ks[0], (channels, 1, kernel_size, kernel_size),
                   kernel_size * kernel_size)
    b_conv = _unif(ks[1], (channels,), kernel_size * kernel_size)
    w_aff = _unif(ks[2], (dim, dim), dim)
    b_aff = _unif(ks[3], (dim,), dim)
    w_log = _unif(ks[4], (num_labels, dim), dim)
    b_log = _unif(ks[5], (num_labels,), dim)
    params = (w_conv, b_conv, w_aff, b_aff, w_log, b_log)

    x = jax.random.normal(ks[6], (batch, image_size, image_size), jnp.float32)

    prepped, meta = prepare_params(
        params, image_size=image_size, num_labels=num_labels,
        kernel_size=kernel_size, channels=channels,
        pooling_kernel_size=pooling_kernel_size, stride=stride)

    out = character_recognizer_forward(x, prepped, meta)
    out = jax.block_until_ready(out)

    ref = reference_forward(
        x, params, kernel_size=kernel_size, channels=channels,
        pooling_kernel_size=pooling_kernel_size, stride=stride,
        num_labels=num_labels)

    assert out.shape == (batch, num_labels), out.shape
    assert jnp.allclose(out, ref, atol=5e-2, rtol=5e-2), (
        "mismatch vs reference", float(jnp.max(jnp.abs(out - ref))))
    print("KERNEL_OK")
</pallas_src>

<mosaic_0001>
module attributes {stable_mosaic.version = 11 : i64} {
  func.func @_recognizer_kernel(%arg0: i32, %arg1: memref<32x512xbf16, #tpu.memory_space<vmem>>, %arg2: memref<512x256xbf16, #tpu.memory_space<vmem>>, %arg3: memref<1x256xf32, #tpu.memory_space<vmem>>, %arg4: memref<256x256xbf16, #tpu.memory_space<vmem>>, %arg5: memref<1x256xf32, #tpu.memory_space<vmem>>, %arg6: memref<256x128xbf16, #tpu.memory_space<vmem>>, %arg7: memref<1x128xf32, #tpu.memory_space<vmem>>, %arg8: memref<8x128xf32, #tpu.memory_space<vmem>>) attributes {dimension_semantics = [#tpu.dimension_semantics<parallel>], iteration_bounds = array<i64: 1>, scalar_prefetch = 0 : i64, scratch_operands = 0 : i64, tpu.core_type = #tpu.core_type<tc>, window_params = [{transform_indices = @transform_0, window_bounds = array<i64: 32, 512>}, {pipeline_mode = #tpu.pipeline_mode<synchronous>, transform_indices = @transform_1, window_bounds = array<i64: 512, 256>}, {pipeline_mode = #tpu.pipeline_mode<synchronous>, transform_indices = @transform_2, window_bounds = array<i64: 1, 256>}, {pipeline_mode = #tpu.pipeline_mode<synchronous>, transform_indices = @transform_3, window_bounds = array<i64: 256, 256>}, {pipeline_mode = #tpu.pipeline_mode<synchronous>, transform_indices = @transform_4, window_bounds = array<i64: 1, 256>}, {pipeline_mode = #tpu.pipeline_mode<synchronous>, transform_indices = @transform_5, window_bounds = array<i64: 256, 128>}, {pipeline_mode = #tpu.pipeline_mode<synchronous>, transform_indices = @transform_6, window_bounds = array<i64: 1, 128>}, {transform_indices = @transform_7, window_bounds = array<i64: 8, 128>}]} {
    %c0 = arith.constant 0 : index
    %c0_0 = arith.constant 0 : index
    %0 = vector.load %arg1[%c0, %c0_0] : memref<32x512xbf16, #tpu.memory_space<vmem>>, vector<32x512xbf16>
    %c0_1 = arith.constant 0 : index
    %c0_2 = arith.constant 0 : index
    %1 = vector.load %arg2[%c0_1, %c0_2] : memref<512x256xbf16, #tpu.memory_space<vmem>>, vector<512x256xbf16>
    %cst = arith.constant dense<0.000000e+00> : vector<32x256xf32>
    %2 = tpu.matmul %0, %1, %cst {dimension_numbers = #tpu.dot_dimension_numbers<[1], [0], [0], [1], [0, 0, 1, 1], [], []>} : vector<32x512xbf16>, vector<512x256xbf16>, vector<32x256xf32> -> vector<32x256xf32>
    %3 = vector.extract_strided_slice %2 {offsets = [0, 0], sizes = [8, 256], strides = [1, 1]} : vector<32x256xf32> to vector<8x256xf32>
    %4 = vector.extract_strided_slice %2 {offsets = [8, 0], sizes = [8, 256], strides = [1, 1]} : vector<32x256xf32> to vector<8x256xf32>
    %5 = arith.maximumf %3, %4 : vector<8x256xf32>
    %6 = vector.extract_strided_slice %2 {offsets = [16, 0], sizes = [8, 256], strides = [1, 1]} : vector<32x256xf32> to vector<8x256xf32>
    %7 = arith.maximumf %5, %6 : vector<8x256xf32>
    %8 = vector.extract_strided_slice %2 {offsets = [24, 0], sizes = [8, 256], strides = [1, 1]} : vector<32x256xf32> to vector<8x256xf32>
    %9 = arith.maximumf %7, %8 : vector<8x256xf32>
    %c0_3 = arith.constant 0 : index
    %c0_4 = arith.constant 0 : index
    %10 = vector.load %arg3[%c0_3, %c0_4] : memref<1x256xf32, #tpu.memory_space<vmem>>, vector<1x256xf32>
    %11 = vector.broadcast %10 : vector<1x256xf32> to vector<8x256xf32>
    %12 = arith.addf %9, %11 : vector<8x256xf32>
    %cst_5 = arith.constant 0.000000e+00 : f32
    %13 = vector.broadcast %cst_5 : f32 to vector<8x256xf32>
    %14 = arith.maximumf %12, %13 : vector<8x256xf32>
    %15 = arith.truncf %14 : vector<8x256xf32> to vector<8x256xbf16>
    %c0_6 = arith.constant 0 : index
    %c0_7 = arith.constant 0 : index
    %16 = vector.load %arg4[%c0_6, %c0_7] : memref<256x256xbf16, #tpu.memory_space<vmem>>, vector<256x256xbf16>
    %cst_8 = arith.constant dense<0.000000e+00> : vector<8x256xf32>
    %17 = tpu.matmul %15, %16, %cst_8 {dimension_numbers = #tpu.dot_dimension_numbers<[1], [0], [0], [1], [0, 0, 1, 1], [], []>} : vector<8x256xbf16>, vector<256x256xbf16>, vector<8x256xf32> -> vector<8x256xf32>
    %c0_9 = arith.constant 0 : index
    %c0_10 = arith.constant 0 : index
    %18 = vector.load %arg5[%c0_9, %c0_10] : memref<1x256xf32, #tpu.memory_space<vmem>>, vector<1x256xf32>
    %19 = vector.broadcast %18 : vector<1x256xf32> to vector<8x256xf32>
    %20 = arith.addf %17, %19 : vector<8x256xf32>
    %cst_11 = arith.constant 0.000000e+00 : f32
    %21 = vector.broadcast %cst_11 : f32 to vector<8x256xf32>
    %22 = arith.maximumf %20, %21 : vector<8x256xf32>
    %23 = arith.truncf %22 : vector<8x256xf32> to vector<8x256xbf16>
    %c0_12 = arith.constant 0 : index
    %c0_13 = arith.constant 0 : index
    %24 = vector.load %arg6[%c0_12, %c0_13] : memref<256x128xbf16, #tpu.memory_space<vmem>>, vector<256x128xbf16>
    %cst_14 = arith.constant dense<0.000000e+00> : vector<8x128xf32>
    %25 = tpu.matmul %23, %24, %cst_14 {dimension_numbers = #tpu.dot_dimension_numbers<[1], [0], [0], [1], [0, 0, 1, 1], [], []>} : vector<8x256xbf16>, vector<256x128xbf16>, vector<8x128xf32> -> vector<8x128xf32>
    %c0_15 = arith.constant 0 : index
    %c0_16 = arith.constant 0 : index
    %26 = vector.load %arg7[%c0_15, %c0_16] : memref<1x128xf32, #tpu.memory_space<vmem>>, vector<1x128xf32>
    %27 = vector.broadcast %26 : vector<1x128xf32> to vector<8x128xf32>
    %28 = arith.addf %25, %27 : vector<8x128xf32>
    %c0_17 = arith.constant 0 : index
    %c0_18 = arith.constant 0 : index
    %29 = vector.load %arg8[%c0_17, %c0_18] : memref<8x128xf32, #tpu.memory_space<vmem>>, vector<8x128xf32>
    tpu.vector_store %arg8[%c0_17, %c0_18], %28 {strides = array<i32>} : memref<8x128xf32, #tpu.memory_space<vmem>>, vector<8x128xf32>,
    return
  }
  func.func @transform_0(%arg0: i32) -> (i32, i32) {
    %c0_i32 = arith.constant 0 : i32
    %c0_i32_0 = arith.constant 0 : i32
    return %arg0, %c0_i32 : i32, i32
  }
  func.func @transform_1(%arg0: i32) -> (i32, i32) {
    %c0_i32 = arith.constant 0 : i32
    %c0_i32_0 = arith.constant 0 : i32
    %c0_i32_1 = arith.constant 0 : i32
    return %c0_i32, %c0_i32_0 : i32, i32
  }
  func.func @transform_2(%arg0: i32) -> (i32, i32) {
    %c0_i32 = arith.constant 0 : i32
    %c0_i32_0 = arith.constant 0 : i32
    %c0_i32_1 = arith.constant 0 : i32
    return %c0_i32, %c0_i32_0 : i32, i32
  }
  func.func @transform_3(%arg0: i32) -> (i32, i32) {
    %c0_i32 = arith.constant 0 : i32
    %c0_i32_0 = arith.constant 0 : i32
    %c0_i32_1 = arith.constant 0 : i32
    return %c0_i32, %c0_i32_0 : i32, i32
  }
  func.func @transform_4(%arg0: i32) -> (i32, i32) {
    %c0_i32 = arith.constant 0 : i32
    %c0_i32_0 = arith.constant 0 : i32
    %c0_i32_1 = arith.constant 0 : i32
    return %c0_i32, %c0_i32_0 : i32, i32
  }
  func.func @transform_5(%arg0: i32) -> (i32, i32) {
    %c0_i32 = arith.constant 0 : i32
    %c0_i32_0 = arith.constant 0 : i32
    %c0_i32_1 = arith.constant 0 : i32
    return %c0_i32, %c0_i32_0 : i32, i32
  }
  func.func @transform_6(%arg0: i32) -> (i32, i32) {
    %c0_i32 = arith.constant 0 : i32
    %c0_i32_0 = arith.constant 0 : i32
    %c0_i32_1 = arith.constant 0 : i32
    return %c0_i32, %c0_i32_0 : i32, i32
  }
  func.func @transform_7(%arg0: i32) -> (i32, i32) {
    %c0_i32 = arith.constant 0 : i32
    %c0_i32_0 = arith.constant 0 : i32
    return %arg0, %c0_i32 : i32, i32
  }
}

</mosaic_0001>

<llo_original>
// kernel: tpu_custom_call.1
$region0: #{tpu_custom_call.1}
  #allocation0 [shape = 'u32[]', space=smem, size = 0x4, offset = 0x4, fixed_abs, tag = 'smem constant byte address 0x4 - core index']
  #allocation1 [shape = 'u32[144,128]{1,0:T(1,128)}', space=vmem, size = 0x12000, scoped, tag = 'internal scratch']
  %s0 = inlined_call_operand.hbm [shape: bf16[32,512], index: 0, kind: input, shape index: {}]
  %s1 = inlined_call_operand.hbm [shape: bf16[512,256], index: 1, kind: input, shape index: {}]
  %s2 = inlined_call_operand.vmem [shape: f32[1,256], index: 2, kind: input, shape index: {}]
  %s3 = inlined_call_operand.hbm [shape: bf16[256,256], index: 3, kind: input, shape index: {}]
  %s4 = inlined_call_operand.vmem [shape: f32[1,256], index: 4, kind: input, shape index: {}]
  %s5 = inlined_call_operand.hbm [shape: bf16[256,128], index: 5, kind: input, shape index: {}]
  %s6 = inlined_call_operand.vmem [shape: f32[1,128], index: 6, kind: input, shape index: {}]
  %s7 = inlined_call_operand.hbm [shape: f32[8,128], index: 7, kind: output, shape index: {}]
  %s8 = sld [smem:[#allocation0]]
  $region54: #{tpu_custom_call.1} parent=0
    _
  %s10 = ssub.s32 1, %s8
  %s11 = scalar_select 0, %s10, %s8
  $region1: #{tpu_custom_call.1} parent=0
    #allocation2 [shape = 'u8[32768]{0}', space=vmem, size = 0x8000, scoped, tag = 'input window, operand 0, single buffered']
    #allocation3 [shape = 's32[1]{0}', space=sflag, size = 0x4, scoped, tag = 'scoped memory for tpu_custom_call.1']
    #allocation4 [shape = 's32[1]{0}', space=sflag, size = 0x4, scoped, tag = 'scoped memory for tpu_custom_call.1']
    #allocation5 [shape = 'u8[262144]{0}', space=vmem, size = 0x40000, scoped, tag = 'input window, operand 1, single buffered']
    #allocation6 [shape = 's32[1]{0}', space=sflag, size = 0x4, scoped, tag = 'scoped memory for tpu_custom_call.1']
    #allocation7 [shape = 'u8[131072]{0}', space=vmem, size = 0x20000, scoped, tag = 'input window, operand 3, single buffered']
    #allocation8 [shape = 'u8[65536]{0}', space=vmem, size = 0x10000, scoped, tag = 'input window, operand 5, single buffered']
    #allocation9 [shape = 's32[1]{0}', space=sflag, size = 0x4, scoped, tag = 'scoped memory for tpu_custom_call.1']
    #allocation10 [shape = 'u8[4096]{0}', space=vmem, size = 0x1000, scoped, tag = 'output window, operand 0, single buffered']
    %12 = vsyncpa [#allocation3], 0
    %13 = vsyncpa [#allocation6], 0
    %14 = vsyncpa [#allocation9], 0
    %15 = vsyncpa [#allocation4], 0
    // Predicated region
    $region2: #{tpu_custom_call.1} parent=1 // pred_check
      _
    $region3: #{tpu_custom_call.1} parent=1 // pred_check_branch
      %17 = sbr.rel (0) target = $region5
    $region4: #{tpu_custom_call.1} parent=1 // pred_region
      %s19 = ssub.s32 1024, 1024
      %20 = vsyncadd [#allocation3], %s19
      %s21 = sshll.u32 [#allocation2], 4
      %s22 = int_to_ptr.vmem [resolvable:$true] %s21
      %27 = dma.hbm_to_vmem [thread:$0]  %s0, 1024, %s22, [#allocation3], 256, 256, 16
    $region5: #{tpu_custom_call.1} parent=1 // pred_fallthru
      _
    // Predicated region
    $region6: #{tpu_custom_call.1} parent=1 // pred_check
      _
    $region7: #{tpu_custom_call.1} parent=1 // pred_check_branch
      %29 = sbr.rel (0) target = $region9
    $region8: #{tpu_custom_call.1} parent=1 // pred_region
      %s31 = ssub.s32 8192, 8192
      %32 = vsyncadd [#allocation6], %s31
      %s33 = sshll.u32 [#allocation5], 4
      %s34 = int_to_ptr.vmem [resolvable:$true] %s33
      %39 = dma.hbm_to_vmem [thread:$0]  %s1, 8192, %s34, [#allocation6], 128, 128, 8
    $region9: #{tpu_custom_call.1} parent=1 // pred_fallthru
      _
    // Predicated region
    $region10: #{tpu_custom_call.1} parent=1 // pred_check
      _
    $region11: #{tpu_custom_call.1} parent=1 // pred_check_branch
      %41 = sbr.rel (0) target = $region13
    $region12: #{tpu_custom_call.1} parent=1 // pred_region
      _
    $region13: #{tpu_custom_call.1} parent=1 // pred_fallthru
      _
    // Predicated region
    $region14: #{tpu_custom_call.1} parent=1 // pred_check
      _
    $region15: #{tpu_custom_call.1} parent=1 // pred_check_branch
      %43 = sbr.rel (0) target = $region17
    $region16: #{tpu_custom_call.1} parent=1 // pred_region
      %s45 = ssub.s32 4096, 4096
      %46 = vsyncadd [#allocation6], %s45
      %s47 = sshll.u32 [#allocation7], 4
      %s48 = int_to_ptr.vmem [resolvable:$true] %s47
      %53 = dma.hbm_to_vmem [thread:$0]  %s3, 4096, %s48, [#allocation6], 128, 128, 8
    $region17: #{tpu_custom_call.1} parent=1 // pred_fallthru
      _
    // Predicated region
    $region18: #{tpu_custom_call.1} parent=1 // pred_check
      _
    $region19: #{tpu_custom_call.1} parent=1 // pred_check_branch
      %55 = sbr.rel (0) target = $region21
    $region20: #{tpu_custom_call.1} parent=1 // pred_region
      _
    $region21: #{tpu_custom_call.1} parent=1 // pred_fallthru
      _
    // Predicated region
    $region22: #{tpu_custom_call.1} parent=1 // pred_check
      _
    $region23: #{tpu_custom_call.1} parent=1 // pred_check_branch
      %57 = sbr.rel (0) target = $region25
    $region24: #{tpu_custom_call.1} parent=1 // pred_region
      %s59 = ssub.s32 2048, 2048
      %60 = vsyncadd [#allocation9], %s59
      %s61 = sshll.u32 [#allocation8], 4
      %s62 = int_to_ptr.vmem [resolvable:$true] %s61
      %67 = dma.hbm_to_vmem [thread:$0]  %s5, 2048, %s62, [#allocation9], 64, 64, 4
    $region25: #{tpu_custom_call.1} parent=1 // pred_fallthru
      _
    // Predicated region
    $region26: #{tpu_custom_call.1} parent=1 // pred_check
      _
    $region27: #{tpu_custom_call.1} parent=1 // pred_check_branch
      %69 = sbr.rel (0) target = $region29
    $region28: #{tpu_custom_call.1} parent=1 // pred_region
      _
    $region29: #{tpu_custom_call.1} parent=1 // pred_fallthru
      _
    // Predicated region
    $region30: #{tpu_custom_call.1} parent=1 // pred_check
      _
    $region31: #{tpu_custom_call.1} parent=1 // pred_check_branch
      %71 = sbr.rel (0) target = $region33
    $region32: #{tpu_custom_call.1} parent=1 // pred_region
      %72 = dma.done [#allocation3], 1024
    $region33: #{tpu_custom_call.1} parent=1 // pred_fallthru
      _
    // Predicated region
    $region34: #{tpu_custom_call.1} parent=1 // pred_check
      _
    $region35: #{tpu_custom_call.1} parent=1 // pred_check_branch
      %74 = sbr.rel (0) target = $region37
    $region36: #{tpu_custom_call.1} parent=1 // pred_region
      %75 = dma.done [#allocation6], 8192
    $region37: #{tpu_custom_call.1} parent=1 // pred_fallthru
      _
    // Predicated region
    $region38: #{tpu_custom_call.1} parent=1 // pred_check
      _
    $region39: #{tpu_custom_call.1} parent=1 // pred_check_branch
      %77 = sbr.rel (0) target = $region41
    $region40: #{tpu_custom_call.1} parent=1 // pred_region
      %78 = dma.done [#allocation6], 4096
    $region41: #{tpu_custom_call.1} parent=1 // pred_fallthru
      _
    // Predicated region
    $region42: #{tpu_custom_call.1} parent=1 // pred_check
      _
    $region43: #{tpu_custom_call.1} parent=1 // pred_check_branch
      %80 = sbr.rel (0) target = $region45
    $region44: #{tpu_custom_call.1} parent=1 // pred_region
      %81 = dma.done [#allocation9], 2048
    $region45: #{tpu_custom_call.1} parent=1 // pred_fallthru
      _
    %v83 = vld [vmem:[#allocation2] sm:$0xff]
    %v84 = vld [vmem:[#allocation2 + $0x8] sm:$0xff]
    %v85 = vld [vmem:[#allocation2 + $0x10] sm:$0xff]
    %v86 = vld [vmem:[#allocation2 + $0x18] sm:$0xff]
    %v87 = vld [vmem:[#allocation2 + $0x20] sm:$0xff]
    %v88 = vld [vmem:[#allocation2 + $0x28] sm:$0xff]
    %v89 = vld [vmem:[#allocation2 + $0x30] sm:$0xff]
    %v90 = vld [vmem:[#allocation2 + $0x38] sm:$0xff]
    %v91 = vld [vmem:[#allocation5] sm:$0xff]
    %v92 = vld [vmem:[#allocation5 + $0x8] sm:$0xff]
    %v93 = vld [vmem:[#allocation5 + $0x10] sm:$0xff]
    %v94 = vld [vmem:[#allocation5 + $0x18] sm:$0xff]
    %v95 = vld [vmem:[#allocation5 + $0x20] sm:$0xff]
    %v96 = vld [vmem:[#allocation5 + $0x28] sm:$0xff]
    %v97 = vld [vmem:[#allocation5 + $0x30] sm:$0xff]
    %v98 = vld [vmem:[#allocation5 + $0x38] sm:$0xff]
    %v99 = vld [vmem:[#allocation5 + $0x40] sm:$0xff]
    %v100 = vld [vmem:[#allocation5 + $0x48] sm:$0xff]
    %v101 = vld [vmem:[#allocation5 + $0x50] sm:$0xff]
    %v102 = vld [vmem:[#allocation5 + $0x58] sm:$0xff]
    %v103 = vld [vmem:[#allocation5 + $0x60] sm:$0xff]
    %v104 = vld [vmem:[#allocation5 + $0x68] sm:$0xff]
    %v105 = vld [vmem:[#allocation5 + $0x70] sm:$0xff]
    %v106 = vld [vmem:[#allocation5 + $0x78] sm:$0xff]
    %v107 = vld [vmem:[#allocation5 + $0x80] sm:$0xff]
    %v108 = vld [vmem:[#allocation5 + $0x88] sm:$0xff]
    %v109 = vld [vmem:[#allocation5 + $0x90] sm:$0xff]
    %v110 = vld [vmem:[#allocation5 + $0x98] sm:$0xff]
    %v111 = vld [vmem:[#allocation5 + $0xa0] sm:$0xff]
    %v112 = vld [vmem:[#allocation5 + $0xa8] sm:$0xff]
    %v113 = vld [vmem:[#allocation5 + $0xb0] sm:$0xff]
    %v114 = vld [vmem:[#allocation5 + $0xb8] sm:$0xff]
    %v115 = vld [vmem:[#allocation5 + $0xc0] sm:$0xff]
    %v116 = vld [vmem:[#allocation5 + $0xc8] sm:$0xff]
    %v117 = vld [vmem:[#allocation5 + $0xd0] sm:$0xff]
    %v118 = vld [vmem:[#allocation5 + $0xd8] sm:$0xff]
    %v119 = vld [vmem:[#allocation5 + $0xe0] sm:$0xff]
    %v120 = vld [vmem:[#allocation5 + $0xe8] sm:$0xff]
    %v121 = vld [vmem:[#allocation5 + $0xf0] sm:$0xff]
    %v122 = vld [vmem:[#allocation5 + $0xf8] sm:$0xff]
    %v123 = vld [vmem:[#allocation5 + $0x100] sm:$0xff]
    %v124 = vld [vmem:[#allocation5 + $0x108] sm:$0xff]
    %v125 = vld [vmem:[#allocation5 + $0x110] sm:$0xff]
    %v126 = vld [vmem:[#allocation5 + $0x118] sm:$0xff]
    %v127 = vld [vmem:[#allocation5 + $0x120] sm:$0xff]
    %v128 = vld [vmem:[#allocation5 + $0x128] sm:$0xff]
    %v129 = vld [vmem:[#allocation5 + $0x130] sm:$0xff]
    %v130 = vld [vmem:[#allocation5 + $0x138] sm:$0xff]
    %v131 = vld [vmem:[#allocation5 + $0x140] sm:$0xff]
    %v132 = vld [vmem:[#allocation5 + $0x148] sm:$0xff]
    %v133 = vld [vmem:[#allocation5 + $0x150] sm:$0xff]
    %v134 = vld [vmem:[#allocation5 + $0x158] sm:$0xff]
    %v135 = vld [vmem:[#allocation5 + $0x160] sm:$0xff]
    %v136 = vld [vmem:[#allocation5 + $0x168] sm:$0xff]
    %v137 = vld [vmem:[#allocation5 + $0x170] sm:$0xff]
    %v138 = vld [vmem:[#allocation5 + $0x178] sm:$0xff]
    %v139 = vld [vmem:[#allocation5 + $0x180] sm:$0xff]
    %v140 = vld [vmem:[#allocation5 + $0x188] sm:$0xff]
    %v141 = vld [vmem:[#allocation5 + $0x190] sm:$0xff]
    %v142 = vld [vmem:[#allocation5 + $0x198] sm:$0xff]
    %v143 = vld [vmem:[#allocation5 + $0x1a0] sm:$0xff]
    %v144 = vld [vmem:[#allocation5 + $0x1a8] sm:$0xff]
    %v145 = vld [vmem:[#allocation5 + $0x1b0] sm:$0xff]
    %v146 = vld [vmem:[#allocation5 + $0x1b8] sm:$0xff]
    %v147 = vld [vmem:[#allocation5 + $0x1c0] sm:$0xff]
    %v148 = vld [vmem:[#allocation5 + $0x1c8] sm:$0xff]
    %v149 = vld [vmem:[#allocation5 + $0x1d0] sm:$0xff]
    %v150 = vld [vmem:[#allocation5 + $0x1d8] sm:$0xff]
    %v151 = vld [vmem:[#allocation5 + $0x1e0] sm:$0xff]
    %v152 = vld [vmem:[#allocation5 + $0x1e8] sm:$0xff]
    %v153 = vld [vmem:[#allocation5 + $0x1f0] sm:$0xff]
    %v154 = vld [vmem:[#allocation5 + $0x1f8] sm:$0xff]
    %v163 = vunpack.c.l.b16 %v83
    %v164 = vunpack.c.h.b16 %v83
    %v165 = vunpack.c.l.b16 %v84
    %v166 = vunpack.c.h.b16 %v84
    %v167 = vunpack.c.l.b16 %v85
    %v168 = vunpack.c.h.b16 %v85
    %v169 = vunpack.c.l.b16 %v86
    %v170 = vunpack.c.h.b16 %v86
    %v171 = vunpack.c.l.b16 %v87
    %v172 = vunpack.c.h.b16 %v87
    %v173 = vunpack.c.l.b16 %v88
    %v174 = vunpack.c.h.b16 %v88
    %v175 = vunpack.c.l.b16 %v89
    %v176 = vunpack.c.h.b16 %v89
    %v177 = vunpack.c.l.b16 %v90
    %v178 = vunpack.c.h.b16 %v90
    %v179 = vpack.c.b16 %v167, %v163
    %v180 = vpack.c.b16 %v168, %v164
    %v181 = vpack.c.b16 %v169, %v165
    %v182 = vpack.c.b16 %v170, %v166
    %v183 = vpack.c.b16 %v175, %v171
    %v184 = vpack.c.b16 %v176, %v172
    %v185 = vpack.c.b16 %v177, %v173
    %v186 = vpack.c.b16 %v178, %v174
    %v259 = vunpack.c.l.b16 %v91
    %v260 = vunpack.c.h.b16 %v91
    %v261 = vunpack.c.l.b16 %v92
    %v262 = vunpack.c.h.b16 %v92
    %v263 = vunpack.c.l.b16 %v93
    %v264 = vunpack.c.h.b16 %v93
    %v265 = vunpack.c.l.b16 %v94
    %v266 = vunpack.c.h.b16 %v94
    %v267 = vunpack.c.l.b16 %v95
    %v268 = vunpack.c.h.b16 %v95
    %v269 = vunpack.c.l.b16 %v96
    %v270 = vunpack.c.h.b16 %v96
    %v271 = vunpack.c.l.b16 %v97
    %v272 = vunpack.c.h.b16 %v97
    %v273 = vunpack.c.l.b16 %v98
    %v274 = vunpack.c.h.b16 %v98
    %v275 = vunpack.c.l.b16 %v99
    %v276 = vunpack.c.h.b16 %v99
    %v277 = vunpack.c.l.b16 %v100
    %v278 = vunpack.c.h.b16 %v100
    %v279 = vunpack.c.l.b16 %v101
    %v280 = vunpack.c.h.b16 %v101
    %v281 = vunpack.c.l.b16 %v102
    %v282 = vunpack.c.h.b16 %v102
    %v283 = vunpack.c.l.b16 %v103
    %v284 = vunpack.c.h.b16 %v103
    %v285 = vunpack.c.l.b16 %v104
    %v286 = vunpack.c.h.b16 %v104
    %v287 = vunpack.c.l.b16 %v105
    %v288 = vunpack.c.h.b16 %v105
    %v289 = vunpack.c.l.b16 %v106
    %v290 = vunpack.c.h.b16 %v106
    %v291 = vunpack.c.l.b16 %v107
    %v292 = vunpack.c.h.b16 %v107
    %v293 = vunpack.c.l.b16 %v108
    %v294 = vunpack.c.h.b16 %v108
    %v295 = vunpack.c.l.b16 %v109
    %v296 = vunpack.c.h.b16 %v109
    %v297 = vunpack.c.l.b16 %v110
    %v298 = vunpack.c.h.b16 %v110
    %v299 = vunpack.c.l.b16 %v111
    %v300 = vunpack.c.h.b16 %v111
    %v301 = vunpack.c.l.b16 %v112
    %v302 = vunpack.c.h.b16 %v112
    %v303 = vunpack.c.l.b16 %v113
    %v304 = vunpack.c.h.b16 %v113
    %v305 = vunpack.c.l.b16 %v114
    %v306 = vunpack.c.h.b16 %v114
    %v307 = vunpack.c.l.b16 %v115
    %v308 = vunpack.c.h.b16 %v115
    %v309 = vunpack.c.l.b16 %v116
    %v310 = vunpack.c.h.b16 %v116
    %v311 = vunpack.c.l.b16 %v117
    %v312 = vunpack.c.h.b16 %v117
    %v313 = vunpack.c.l.b16 %v118
    %v314 = vunpack.c.h.b16 %v118
    %v315 = vunpack.c.l.b16 %v119
    %v316 = vunpack.c.h.b16 %v119
    %v317 = vunpack.c.l.b16 %v120
    %v318 = vunpack.c.h.b16 %v120
    %v319 = vunpack.c.l.b16 %v121
    %v320 = vunpack.c.h.b16 %v121
    %v321 = vunpack.c.l.b16 %v122
    %v322 = vunpack.c.h.b16 %v122
    %v323 = vunpack.c.l.b16 %v123
    %v324 = vunpack.c.h.b16 %v123
    %v325 = vunpack.c.l.b16 %v124
    %v326 = vunpack.c.h.b16 %v124
    %v327 = vunpack.c.l.b16 %v125
    %v328 = vunpack.c.h.b16 %v125
    %v329 = vunpack.c.l.b16 %v126
    %v330 = vunpack.c.h.b16 %v126
    %v331 = vunpack.c.l.b16 %v127
    %v332 = vunpack.c.h.b16 %v127
    %v333 = vunpack.c.l.b16 %v128
    %v334 = vunpack.c.h.b16 %v128
    %v335 = vunpack.c.l.b16 %v129
    %v336 = vunpack.c.h.b16 %v129
    %v337 = vunpack.c.l.b16 %v130
    %v338 = vunpack.c.h.b16 %v130
    %v339 = vunpack.c.l.b16 %v131
    %v340 = vunpack.c.h.b16 %v131
    %v341 = vunpack.c.l.b16 %v132
    %v342 = vunpack.c.h.b16 %v132
    %v343 = vunpack.c.l.b16 %v133
    %v344 = vunpack.c.h.b16 %v133
    %v345 = vunpack.c.l.b16 %v134
    %v346 = vunpack.c.h.b16 %v134
    %v347 = vunpack.c.l.b16 %v135
    %v348 = vunpack.c.h.b16 %v135
    %v349 = vunpack.c.l.b16 %v136
    %v350 = vunpack.c.h.b16 %v136
    %v351 = vunpack.c.l.b16 %v137
    %v352 = vunpack.c.h.b16 %v137
    %v353 = vunpack.c.l.b16 %v138
    %v354 = vunpack.c.h.b16 %v138
    %v355 = vunpack.c.l.b16 %v139
    %v356 = vunpack.c.h.b16 %v139
    %v357 = vunpack.c.l.b16 %v140
    %v358 = vunpack.c.h.b16 %v140
    %v359 = vunpack.c.l.b16 %v141
    %v360 = vunpack.c.h.b16 %v141
    %v361 = vunpack.c.l.b16 %v142
    %v362 = vunpack.c.h.b16 %v142
    %v363 = vunpack.c.l.b16 %v143
    %v364 = vunpack.c.h.b16 %v143
    %v365 = vunpack.c.l.b16 %v144
    %v366 = vunpack.c.h.b16 %v144
    %v367 = vunpack.c.l.b16 %v145
    %v368 = vunpack.c.h.b16 %v145
    %v369 = vunpack.c.l.b16 %v146
    %v370 = vunpack.c.h.b16 %v146
    %v371 = vunpack.c.l.b16 %v147
    %v372 = vunpack.c.h.b16 %v147
    %v373 = vunpack.c.l.b16 %v148
    %v374 = vunpack.c.h.b16 %v148
    %v375 = vunpack.c.l.b16 %v149
    %v376 = vunpack.c.h.b16 %v149
    %v377 = vunpack.c.l.b16 %v150
    %v378 = vunpack.c.h.b16 %v150
    %v379 = vunpack.c.l.b16 %v151
    %v380 = vunpack.c.h.b16 %v151
    %v381 = vunpack.c.l.b16 %v152
    %v382 = vunpack.c.h.b16 %v152
    %v383 = vunpack.c.l.b16 %v153
    %v384 = vunpack.c.h.b16 %v153
    %v385 = vunpack.c.l.b16 %v154
    %v386 = vunpack.c.h.b16 %v154
    %v387 = vpack.c.b16 %v261, %v259
    %v388 = vpack.c.b16 %v262, %v260
    %v389 = vpack.c.b16 %v265, %v263
    %v390 = vpack.c.b16 %v266, %v264
    %v391 = vpack.c.b16 %v269, %v267
    %v392 = vpack.c.b16 %v270, %v268
    %v393 = vpack.c.b16 %v273, %v271
    %v394 = vpack.c.b16 %v274, %v272
    %v395 = vpack.c.b16 %v277, %v275
    %v396 = vpack.c.b16 %v278, %v276
    %v397 = vpack.c.b16 %v281, %v279
    %v398 = vpack.c.b16 %v282, %v280
    %v399 = vpack.c.b16 %v285, %v283
    %v400 = vpack.c.b16 %v286, %v284
    %v401 = vpack.c.b16 %v289, %v287
    %v402 = vpack.c.b16 %v290, %v288
    %v403 = vpack.c.b16 %v293, %v291
    %v404 = vpack.c.b16 %v294, %v292
    %v405 = vpack.c.b16 %v297, %v295
    %v406 = vpack.c.b16 %v298, %v296
    %v407 = vpack.c.b16 %v301, %v299
    %v408 = vpack.c.b16 %v302, %v300
    %v409 = vpack.c.b16 %v305, %v303
    %v410 = vpack.c.b16 %v306, %v304
    %v411 = vpack.c.b16 %v309, %v307
    %v412 = vpack.c.b16 %v310, %v308
    %v413 = vpack.c.b16 %v313, %v311
    %v414 = vpack.c.b16 %v314, %v312
    %v415 = vpack.c.b16 %v317, %v315
    %v416 = vpack.c.b16 %v318, %v316
    %v417 = vpack.c.b16 %v321, %v319
    %v418 = vpack.c.b16 %v322, %v320
    %v419 = vpack.c.b16 %v325, %v323
    %v420 = vpack.c.b16 %v326, %v324
    %v421 = vpack.c.b16 %v329, %v327
    %v422 = vpack.c.b16 %v330, %v328
    %v423 = vpack.c.b16 %v333, %v331
    %v424 = vpack.c.b16 %v334, %v332
    %v425 = vpack.c.b16 %v337, %v335
    %v426 = vpack.c.b16 %v338, %v336
    %v427 = vpack.c.b16 %v341, %v339
    %v428 = vpack.c.b16 %v342, %v340
    %v429 = vpack.c.b16 %v345, %v343
    %v430 = vpack.c.b16 %v346, %v344
    %v431 = vpack.c.b16 %v349, %v347
    %v432 = vpack.c.b16 %v350, %v348
    %v433 = vpack.c.b16 %v353, %v351
    %v434 = vpack.c.b16 %v354, %v352
    %v435 = vpack.c.b16 %v357, %v355
    %v436 = vpack.c.b16 %v358, %v356
    %v437 = vpack.c.b16 %v361, %v359
    %v438 = vpack.c.b16 %v362, %v360
    %v439 = vpack.c.b16 %v365, %v363
    %v440 = vpack.c.b16 %v366, %v364
    %v441 = vpack.c.b16 %v369, %v367
    %v442 = vpack.c.b16 %v370, %v368
    %v443 = vpack.c.b16 %v373, %v371
    %v444 = vpack.c.b16 %v374, %v372
    %v445 = vpack.c.b16 %v377, %v375
    %v446 = vpack.c.b16 %v378, %v376
    %v447 = vpack.c.b16 %v381, %v379
    %v448 = vpack.c.b16 %v382, %v380
    %v449 = vpack.c.b16 %v385, %v383
    %v450 = vpack.c.b16 %v386, %v384
    %515 = vmatprep.subr.bf16.mxu0 %v388
    %516 = vmatpush1.bf16.msra.mxu0 %v387
    %517 = vmatprep.subr.bf16.mxu0 %v390
    %518 = vmatpush1.bf16.msra.mxu0 %v389
    %519 = vmatprep.subr.bf16.mxu0 %v392
    %520 = vmatpush1.bf16.msra.mxu0 %v391
    %521 = vmatprep.subr.bf16.mxu0 %v394
    %522 = vmatpush1.bf16.msra.mxu0 %v393
    %523 = vmatprep.subr.bf16.mxu0 %v396
    %524 = vmatpush1.bf16.msra.mxu0 %v395
    %525 = vmatprep.subr.bf16.mxu0 %v398
    %526 = vmatpush1.bf16.msra.mxu0 %v397
    %527 = vmatprep.subr.bf16.mxu0 %v400
    %528 = vmatpush1.bf16.msra.mxu0 %v399
    %529 = vmatprep.subr.bf16.mxu0 %v402
    %530 = vmatpush1.bf16.msra.mxu0 %v401
    %531 = vmatprep.subr.bf16.mxu0 %v404
    %532 = vmatpush1.bf16.msra.mxu0 %v403
    %533 = vmatprep.subr.bf16.mxu0 %v406
    %534 = vmatpush1.bf16.msra.mxu0 %v405
    %535 = vmatprep.subr.bf16.mxu0 %v408
    %536 = vmatpush1.bf16.msra.mxu0 %v407
    %537 = vmatprep.subr.bf16.mxu0 %v410
    %538 = vmatpush1.bf16.msra.mxu0 %v409
    %539 = vmatprep.subr.bf16.mxu0 %v412
    %540 = vmatpush1.bf16.msra.mxu0 %v411
    %541 = vmatprep.subr.bf16.mxu0 %v414
    %542 = vmatpush1.bf16.msra.mxu0 %v413
    %543 = vmatprep.subr.bf16.mxu0 %v416
    %544 = vmatpush1.bf16.msra.mxu0 %v415
    %545 = vmatprep.subr.bf16.mxu0 %v418
    %546 = vmatpush1.bf16.msra.mxu0 %v417
    %547 = vmatprep.mubr.bf16.mxu0 %v180
    %548 = vmatmul.mubr.bf16.gmra.mrb[0].mxu0 %v179
    %v549 = vpop.f32.mrb[0].mxu0
    %v550 = vadd.f32 0.0, %v549
    %v551 = vpop.f32.mrb[0].mxu0
    %v552 = vadd.f32 0.0, %v551
    %v553 = vpop.f32.mrb[0].mxu0
    %v554 = vadd.f32 0.0, %v553
    %v555 = vpop.f32.mrb[0].mxu0
    %v556 = vadd.f32 0.0, %v555
    %557 = vmatprep.mubr.bf16.mxu0 %v184
    %558 = vmatmul.mubr.bf16.gmra.mrb[0].mxu0 %v183
    %v559 = vpop.f32.mrb[0].mxu0
    %v560 = vadd.f32 0.0, %v559
    %v561 = vpop.f32.mrb[0].mxu0
    %v562 = vadd.f32 0.0, %v561
    %v563 = vpop.f32.mrb[0].mxu0
    %v564 = vadd.f32 0.0, %v563
    %v565 = vpop.f32.mrb[0].mxu0
    %v566 = vadd.f32 0.0, %v565
    %567 = vdwg.mxu0
    %568 = vmatprep.subr.bf16.mxu0 %v420
    %569 = vmatpush1.bf16.msra.mxu0 %v419
    %570 = vmatprep.subr.bf16.mxu0 %v422
    %571 = vmatpush1.bf16.msra.mxu0 %v421
    %572 = vmatprep.subr.bf16.mxu0 %v424
    %573 = vmatpush1.bf16.msra.mxu0 %v423
    %574 = vmatprep.subr.bf16.mxu0 %v426
    %575 = vmatpush1.bf16.msra.mxu0 %v425
    %576 = vmatprep.subr.bf16.mxu0 %v428
    %577 = vmatpush1.bf16.msra.mxu0 %v427
    %578 = vmatprep.subr.bf16.mxu0 %v430
    %579 = vmatpush1.bf16.msra.mxu0 %v429
    %580 = vmatprep.subr.bf16.mxu0 %v432
    %581 = vmatpush1.bf16.msra.mxu0 %v431
    %582 = vmatprep.subr.bf16.mxu0 %v434
    %583 = vmatpush1.bf16.msra.mxu0 %v433
    %584 = vmatprep.subr.bf16.mxu0 %v436
    %585 = vmatpush1.bf16.msra.mxu0 %v435
    %586 = vmatprep.subr.bf16.mxu0 %v438
    %587 = vmatpush1.bf16.msra.mxu0 %v437
    %588 = vmatprep.subr.bf16.mxu0 %v440
    %589 = vmatpush1.bf16.msra.mxu0 %v439
    %590 = vmatprep.subr.bf16.mxu0 %v442
    %591 = vmatpush1.bf16.msra.mxu0 %v441
    %592 = vmatprep.subr.bf16.mxu0 %v444
    %593 = vmatpush1.bf16.msra.mxu0 %v443
    %594 = vmatprep.subr.bf16.mxu0 %v446
    %595 = vmatpush1.bf16.msra.mxu0 %v445
    %596 = vmatprep.subr.bf16.mxu0 %v448
    %597 = vmatpush1.bf16.msra.mxu0 %v447
    %598 = vmatprep.subr.bf16.mxu0 %v450
    %599 = vmatpush1.bf16.msra.mxu0 %v449
    %600 = vmatprep.mubr.bf16.mxu0 %v182
    %601 = vmatmul.mubr.bf16.gmra.mrb[0].mxu0 %v181
    %v602 = vpop.f32.mrb[0].mxu0
    %v603 = vadd.f32 %v550, %v602
    %v604 = vpop.f32.mrb[0].mxu0
    %v605 = vadd.f32 %v552, %v604
    %v606 = vpop.f32.mrb[0].mxu0
    %v607 = vadd.f32 %v554, %v606
    %v608 = vpop.f32.mrb[0].mxu0
    %v609 = vadd.f32 %v556, %v608
    %610 = vmatprep.mubr.bf16.mxu0 %v186
    %611 = vmatmul.mubr.bf16.gmra.mrb[0].mxu0 %v185
    %v612 = vpop.f32.mrb[0].mxu0
    %v613 = vadd.f32 %v560, %v612
    %v614 = vpop.f32.mrb[0].mxu0
    %v615 = vadd.f32 %v562, %v614
    %v616 = vpop.f32.mrb[0].mxu0
    %v617 = vadd.f32 %v564, %v616
    %v618 = vpop.f32.mrb[0].mxu0
    %v619 = vadd.f32 %v566, %v618
    %620 = vdwg.mxu0
    %v621 = vmax.f32 %v603, %v607
    %v622 = vmax.f32 %v605, %v609
    %v623 = vmax.f32 %v621, %v613
    %v624 = vmax.f32 %v622, %v615
    %v625 = vmax.f32 %v623, %v617
    %v626 = vmax.f32 %v624, %v619
    %v627 = vld [vmem:[%s2] sm:$0x3]
    %v629 = vlaneseq
    %v630 = vshrl.u32 %v629, 7
    %v631 = vsub.s32 0, %v630
    %v632 = vrot.slane %v627, %v631
    %v633 = vlaneseq
    %v634 = vshrl.u32 %v633, 7
    %v635 = vsub.s32 1, %v634
    %v636 = vrot.slane %v627, %v635
    %v639 = vadd.f32 %v625, %v632
    %v640 = vadd.f32 %v626, %v636
    %v641 = vmax.f32 %v639, 0.0
    %v642 = vmax.f32 %v640, 0.0
    %v643 = vpack.c.bf16 %v641, %v641
    %v644 = vpack.c.bf16 %v642, %v642
    %v645 = vld [vmem:[#allocation7] sm:$0xff]
    %v646 = vld [vmem:[#allocation7 + $0x8] sm:$0xff]
    %v647 = vld [vmem:[#allocation7 + $0x10] sm:$0xff]
    %v648 = vld [vmem:[#allocation7 + $0x18] sm:$0xff]
    %v649 = vld [vmem:[#allocation7 + $0x20] sm:$0xff]
    %v650 = vld [vmem:[#allocation7 + $0x28] sm:$0xff]
    %v651 = vld [vmem:[#allocation7 + $0x30] sm:$0xff]
    %v652 = vld [vmem:[#allocation7 + $0x38] sm:$0xff]
    %v653 = vld [vmem:[#allocation7 + $0x40] sm:$0xff]
    %v654 = vld [vmem:[#allocation7 + $0x48] sm:$0xff]
    %v655 = vld [vmem:[#allocation7 + $0x50] sm:$0xff]
    %v656 = vld [vmem:[#allocation7 + $0x58] sm:$0xff]
    %v657 = vld [vmem:[#allocation7 + $0x60] sm:$0xff]
    %v658 = vld [vmem:[#allocation7 + $0x68] sm:$0xff]
    %v659 = vld [vmem:[#allocation7 + $0x70] sm:$0xff]
    %v660 = vld [vmem:[#allocation7 + $0x78] sm:$0xff]
    %v661 = vld [vmem:[#allocation7 + $0x80] sm:$0xff]
    %v662 = vld [vmem:[#allocation7 + $0x88] sm:$0xff]
    %v663 = vld [vmem:[#allocation7 + $0x90] sm:$0xff]
    %v664 = vld [vmem:[#allocation7 + $0x98] sm:$0xff]
    %v665 = vld [vmem:[#allocation7 + $0xa0] sm:$0xff]
    %v666 = vld [vmem:[#allocation7 + $0xa8] sm:$0xff]
    %v667 = vld [vmem:[#allocation7 + $0xb0] sm:$0xff]
    %v668 = vld [vmem:[#allocation7 + $0xb8] sm:$0xff]
    %v669 = vld [vmem:[#allocation7 + $0xc0] sm:$0xff]
    %v670 = vld [vmem:[#allocation7 + $0xc8] sm:$0xff]
    %v671 = vld [vmem:[#allocation7 + $0xd0] sm:$0xff]
    %v672 = vld [vmem:[#allocation7 + $0xd8] sm:$0xff]
    %v673 = vld [vmem:[#allocation7 + $0xe0] sm:$0xff]
    %v674 = vld [vmem:[#allocation7 + $0xe8] sm:$0xff]
    %v675 = vld [vmem:[#allocation7 + $0xf0] sm:$0xff]
    %v676 = vld [vmem:[#allocation7 + $0xf8] sm:$0xff]
    %v677 = vld [vmem:[%s4] sm:$0x3]
    %v679 = vlaneseq
    %v680 = vshrl.u32 %v679, 7
    %v681 = vsub.s32 0, %v680
    %v682 = vrot.slane %v677, %v681
    %v683 = vlaneseq
    %v684 = vshrl.u32 %v683, 7
    %v685 = vsub.s32 1, %v684
    %v686 = vrot.slane %v677, %v685
    %v721 = vunpack.c.l.b16 %v645
    %v722 = vunpack.c.h.b16 %v645
    %v723 = vunpack.c.l.b16 %v646
    %v724 = vunpack.c.h.b16 %v646
    %v725 = vunpack.c.l.b16 %v647
    %v726 = vunpack.c.h.b16 %v647
    %v727 = vunpack.c.l.b16 %v648
    %v728 = vunpack.c.h.b16 %v648
    %v729 = vunpack.c.l.b16 %v649
    %v730 = vunpack.c.h.b16 %v649
    %v731 = vunpack.c.l.b16 %v650
    %v732 = vunpack.c.h.b16 %v650
    %v733 = vunpack.c.l.b16 %v651
    %v734 = vunpack.c.h.b16 %v651
    %v735 = vunpack.c.l.b16 %v652
    %v736 = vunpack.c.h.b16 %v652
    %v737 = vunpack.c.l.b16 %v653
    %v738 = vunpack.c.h.b16 %v653
    %v739 = vunpack.c.l.b16 %v654
    %v740 = vunpack.c.h.b16 %v654
    %v741 = vunpack.c.l.b16 %v655
    %v742 = vunpack.c.h.b16 %v655
    %v743 = vunpack.c.l.b16 %v656
    %v744 = vunpack.c.h.b16 %v656
    %v745 = vunpack.c.l.b16 %v657
    %v746 = vunpack.c.h.b16 %v657
    %v747 = vunpack.c.l.b16 %v658
    %v748 = vunpack.c.h.b16 %v658
    %v749 = vunpack.c.l.b16 %v659
    %v750 = vunpack.c.h.b16 %v659
    %v751 = vunpack.c.l.b16 %v660
    %v752 = vunpack.c.h.b16 %v660
    %v753 = vunpack.c.l.b16 %v661
    %v754 = vunpack.c.h.b16 %v661
    %v755 = vunpack.c.l.b16 %v662
    %v756 = vunpack.c.h.b16 %v662
    %v757 = vunpack.c.l.b16 %v663
    %v758 = vunpack.c.h.b16 %v663
    %v759 = vunpack.c.l.b16 %v664
    %v760 = vunpack.c.h.b16 %v664
    %v761 = vunpack.c.l.b16 %v665
    %v762 = vunpack.c.h.b16 %v665
    %v763 = vunpack.c.l.b16 %v666
    %v764 = vunpack.c.h.b16 %v666
    %v765 = vunpack.c.l.b16 %v667
    %v766 = vunpack.c.h.b16 %v667
    %v767 = vunpack.c.l.b16 %v668
    %v768 = vunpack.c.h.b16 %v668
    %v769 = vunpack.c.l.b16 %v669
    %v770 = vunpack.c.h.b16 %v669
    %v771 = vunpack.c.l.b16 %v670
    %v772 = vunpack.c.h.b16 %v670
    %v773 = vunpack.c.l.b16 %v671
    %v774 = vunpack.c.h.b16 %v671
    %v775 = vunpack.c.l.b16 %v672
    %v776 = vunpack.c.h.b16 %v672
    %v777 = vunpack.c.l.b16 %v673
    %v778 = vunpack.c.h.b16 %v673
    %v779 = vunpack.c.l.b16 %v674
    %v780 = vunpack.c.h.b16 %v674
    %v781 = vunpack.c.l.b16 %v675
    %v782 = vunpack.c.h.b16 %v675
    %v783 = vunpack.c.l.b16 %v676
    %v784 = vunpack.c.h.b16 %v676
    %v785 = vpack.c.b16 %v723, %v721
    %v786 = vpack.c.b16 %v724, %v722
    %v787 = vpack.c.b16 %v727, %v725
    %v788 = vpack.c.b16 %v728, %v726
    %v789 = vpack.c.b16 %v731, %v729
    %v790 = vpack.c.b16 %v732, %v730
    %v791 = vpack.c.b16 %v735, %v733
    %v792 = vpack.c.b16 %v736, %v734
    %v793 = vpack.c.b16 %v739, %v737
    %v794 = vpack.c.b16 %v740, %v738
    %v795 = vpack.c.b16 %v743, %v741
    %v796 = vpack.c.b16 %v744, %v742
    %v797 = vpack.c.b16 %v747, %v745
    %v798 = vpack.c.b16 %v748, %v746
    %v799 = vpack.c.b16 %v751, %v749
    %v800 = vpack.c.b16 %v752, %v750
    %v801 = vpack.c.b16 %v755, %v753
    %v802 = vpack.c.b16 %v756, %v754
    %v803 = vpack.c.b16 %v759, %v757
    %v804 = vpack.c.b16 %v760, %v758
    %v805 = vpack.c.b16 %v763, %v761
    %v806 = vpack.c.b16 %v764, %v762
    %v807 = vpack.c.b16 %v767, %v765
    %v808 = vpack.c.b16 %v768, %v766
    %v809 = vpack.c.b16 %v771, %v769
    %v810 = vpack.c.b16 %v772, %v770
    %v811 = vpack.c.b16 %v775, %v773
    %v812 = vpack.c.b16 %v776, %v774
    %v813 = vpack.c.b16 %v779, %v777
    %v814 = vpack.c.b16 %v780, %v778
    %v815 = vpack.c.b16 %v783, %v781
    %v816 = vpack.c.b16 %v784, %v782
    %849 = vmatprep.subr.bf16.mxu0 %v786
    %850 = vmatpush1.bf16.msra.mxu0 %v785
    %851 = vmatprep.subr.bf16.mxu0 %v788
    %852 = vmatpush1.bf16.msra.mxu0 %v787
    %853 = vmatprep.subr.bf16.mxu0 %v790
    %854 = vmatpush1.bf16.msra.mxu0 %v789
    %855 = vmatprep.subr.bf16.mxu0 %v792
    %856 = vmatpush1.bf16.msra.mxu0 %v791
    %857 = vmatprep.subr.bf16.mxu0 %v794
    %858 = vmatpush1.bf16.msra.mxu0 %v793
    %859 = vmatprep.subr.bf16.mxu0 %v796
    %860 = vmatpush1.bf16.msra.mxu0 %v795
    %861 = vmatprep.subr.bf16.mxu0 %v798
    %862 = vmatpush1.bf16.msra.mxu0 %v797
    %863 = vmatprep.subr.bf16.mxu0 %v800
    %864 = vmatpush1.bf16.msra.mxu0 %v799
    %865 = vmatprep.subr.bf16.mxu0 %v802
    %866 = vmatpush1.bf16.msra.mxu0 %v801
    %867 = vmatprep.subr.bf16.mxu0 %v804
    %868 = vmatpush1.bf16.msra.mxu0 %v803
    %869 = vmatprep.subr.bf16.mxu0 %v806
    %870 = vmatpush1.bf16.msra.mxu0 %v805
    %871 = vmatprep.subr.bf16.mxu0 %v808
    %872 = vmatpush1.bf16.msra.mxu0 %v807
    %873 = vmatprep.subr.bf16.mxu0 %v810
    %874 = vmatpush1.bf16.msra.mxu0 %v809
    %875 = vmatprep.subr.bf16.mxu0 %v812
    %876 = vmatpush1.bf16.msra.mxu0 %v811
    %877 = vmatprep.subr.bf16.mxu0 %v814
    %878 = vmatpush1.bf16.msra.mxu0 %v813
    %879 = vmatprep.subr.bf16.mxu0 %v816
    %880 = vmatpush1.bf16.msra.mxu0 %v815
    %881 = vmatprep.mubr.bf16.mxu0 %v644
    %882 = vmatmul.mubr.bf16.gmra.mrb[0].mxu0 %v643
    %v883 = vpop.f32.mrb[0].mxu0
    %v884 = vadd.f32 %v682, %v883
    %v885 = vpop.f32.mrb[0].mxu0
    %v886 = vadd.f32 %v686, %v885
    %v887 = vpop.f32.mrb[0].mxu0
    %v888 = vpop.f32.mrb[0].mxu0
    %889 = vdwg.mxu0
    %v890 = vmax.f32 %v884, 0.0
    %v891 = vmax.f32 %v886, 0.0
    %v892 = vpack.c.bf16 %v890, %v890
    %v893 = vpack.c.bf16 %v891, %v891
    %v894 = vld [vmem:[#allocation8] sm:$0xf]
    %v895 = vld [vmem:[#allocation8 + $0x4] sm:$0xf]
    %v896 = vld [vmem:[#allocation8 + $0x8] sm:$0xf]
    %v897 = vld [vmem:[#allocation8 + $0xc] sm:$0xf]
    %v898 = vld [vmem:[#allocation8 + $0x10] sm:$0xf]
    %v899 = vld [vmem:[#allocation8 + $0x14] sm:$0xf]
    %v900 = vld [vmem:[#allocation8 + $0x18] sm:$0xf]
    %v901 = vld [vmem:[#allocation8 + $0x1c] sm:$0xf]
    %v902 = vld [vmem:[#allocation8 + $0x20] sm:$0xf]
    %v903 = vld [vmem:[#allocation8 + $0x24] sm:$0xf]
    %v904 = vld [vmem:[#allocation8 + $0x28] sm:$0xf]
    %v905 = vld [vmem:[#allocation8 + $0x2c] sm:$0xf]
    %v906 = vld [vmem:[#allocation8 + $0x30] sm:$0xf]
    %v907 = vld [vmem:[#allocation8 + $0x34] sm:$0xf]
    %v908 = vld [vmem:[#allocation8 + $0x38] sm:$0xf]
    %v909 = vld [vmem:[#allocation8 + $0x3c] sm:$0xf]
    %v910 = vld [vmem:[#allocation8 + $0x40] sm:$0xf]
    %v911 = vld [vmem:[#allocation8 + $0x44] sm:$0xf]
    %v912 = vld [vmem:[#allocation8 + $0x48] sm:$0xf]
    %v913 = vld [vmem:[#allocation8 + $0x4c] sm:$0xf]
    %v914 = vld [vmem:[#allocation8 + $0x50] sm:$0xf]
    %v915 = vld [vmem:[#allocation8 + $0x54] sm:$0xf]
    %v916 = vld [vmem:[#allocation8 + $0x58] sm:$0xf]
    %v917 = vld [vmem:[#allocation8 + $0x5c] sm:$0xf]
    %v918 = vld [vmem:[#allocation8 + $0x60] sm:$0xf]
    %v919 = vld [vmem:[#allocation8 + $0x64] sm:$0xf]
    %v920 = vld [vmem:[#allocation8 + $0x68] sm:$0xf]
    %v921 = vld [vmem:[#allocation8 + $0x6c] sm:$0xf]
    %v922 = vld [vmem:[#allocation8 + $0x70] sm:$0xf]
    %v923 = vld [vmem:[#allocation8 + $0x74] sm:$0xf]
    %v924 = vld [vmem:[#allocation8 + $0x78] sm:$0xf]
    %v925 = vld [vmem:[#allocation8 + $0x7c] sm:$0xf]
    %v926 = vld [vmem:[%s6] sm:$0x1]
    %v928 = vlaneseq
    %v929 = vshrl.u32 %v928, 7
    %v930 = vsub.s32 0, %v929
    %v931 = vrot.slane %v926, %v930
    %v965 = vunpack.c.l.b16 %v894
    %v966 = vunpack.c.l.b16 %v895
    %v967 = vunpack.c.l.b16 %v896
    %v968 = vunpack.c.l.b16 %v897
    %v969 = vunpack.c.l.b16 %v898
    %v970 = vunpack.c.l.b16 %v899
    %v971 = vunpack.c.l.b16 %v900
    %v972 = vunpack.c.l.b16 %v901
    %v973 = vunpack.c.l.b16 %v902
    %v974 = vunpack.c.l.b16 %v903
    %v975 = vunpack.c.l.b16 %v904
    %v976 = vunpack.c.l.b16 %v905
    %v977 = vunpack.c.l.b16 %v906
    %v978 = vunpack.c.l.b16 %v907
    %v979 = vunpack.c.l.b16 %v908
    %v980 = vunpack.c.l.b16 %v909
    %v981 = vunpack.c.l.b16 %v910
    %v982 = vunpack.c.l.b16 %v911
    %v983 = vunpack.c.l.b16 %v912
    %v984 = vunpack.c.l.b16 %v913
    %v985 = vunpack.c.l.b16 %v914
    %v986 = vunpack.c.l.b16 %v915
    %v987 = vunpack.c.l.b16 %v916
    %v988 = vunpack.c.l.b16 %v917
    %v989 = vunpack.c.l.b16 %v918
    %v990 = vunpack.c.l.b16 %v919
    %v991 = vunpack.c.l.b16 %v920
    %v992 = vunpack.c.l.b16 %v921
    %v993 = vunpack.c.l.b16 %v922
    %v994 = vunpack.c.l.b16 %v923
    %v995 = vunpack.c.l.b16 %v924
    %v996 = vunpack.c.l.b16 %v925
    %v997 = vpack.c.b16 %v966, %v965
    %v998 = vpack.c.b16 %v968, %v967
    %v999 = vpack.c.b16 %v970, %v969
    %v1000 = vpack.c.b16 %v972, %v971
    %v1001 = vpack.c.b16 %v974, %v973
    %v1002 = vpack.c.b16 %v976, %v975
    %v1003 = vpack.c.b16 %v978, %v977
    %v1004 = vpack.c.b16 %v980, %v979
    %v1005 = vpack.c.b16 %v982, %v981
    %v1006 = vpack.c.b16 %v984, %v983
    %v1007 = vpack.c.b16 %v986, %v985
    %v1008 = vpack.c.b16 %v988, %v987
    %v1009 = vpack.c.b16 %v990, %v989
    %v1010 = vpack.c.b16 %v992, %v991
    %v1011 = vpack.c.b16 %v994, %v993
    %v1012 = vpack.c.b16 %v996, %v995
    %1029 = vmatprep.subr.bf16.mxu0 0
    %1030 = vmatpush1.bf16.msra.mxu0 %v997
    %1031 = vmatprep.subr.bf16.mxu0 0
    %1032 = vmatpush1.bf16.msra.mxu0 %v998
    %1033 = vmatprep.subr.bf16.mxu0 0
    %1034 = vmatpush1.bf16.msra.mxu0 %v999
    %1035 = vmatprep.subr.bf16.mxu0 0
    %1036 = vmatpush1.bf16.msra.mxu0 %v1000
    %1037 = vmatprep.subr.bf16.mxu0 0
    %1038 = vmatpush1.bf16.msra.mxu0 %v1001
    %1039 = vmatprep.subr.bf16.mxu0 0
    %1040 = vmatpush1.bf16.msra.mxu0 %v1002
    %1041 = vmatprep.subr.bf16.mxu0 0
    %1042 = vmatpush1.bf16.msra.mxu0 %v1003
    %1043 = vmatprep.subr.bf16.mxu0 0
    %1044 = vmatpush1.bf16.msra.mxu0 %v1004
    %1045 = vmatprep.subr.bf16.mxu0 0
    %1046 = vmatpush1.bf16.msra.mxu0 %v1005
    %1047 = vmatprep.subr.bf16.mxu0 0
    %1048 = vmatpush1.bf16.msra.mxu0 %v1006
    %1049 = vmatprep.subr.bf16.mxu0 0
    %1050 = vmatpush1.bf16.msra.mxu0 %v1007
    %1051 = vmatprep.subr.bf16.mxu0 0
    %1052 = vmatpush1.bf16.msra.mxu0 %v1008
    %1053 = vmatprep.subr.bf16.mxu0 0
    %1054 = vmatpush1.bf16.msra.mxu0 %v1009
    %1055 = vmatprep.subr.bf16.mxu0 0
    %1056 = vmatpush1.bf16.msra.mxu0 %v1010
    %1057 = vmatprep.subr.bf16.mxu0 0
    %1058 = vmatpush1.bf16.msra.mxu0 %v1011
    %1059 = vmatprep.subr.bf16.mxu0 0
    %1060 = vmatpush1.bf16.msra.mxu0 %v1012
    %1061 = vmatprep.mubr.bf16.mxu0 %v893
    %1062 = vmatmul.mubr.bf16.gmra.mrb[0].mxu0 %v892
    %v1063 = vpop.f32.mrb[0].mxu0
    %v1064 = vadd.f32 %v931, %v1063
    %v1065 = vpop.f32.mrb[0].mxu0
    %v1066 = vpop.f32.mrb[0].mxu0
    %v1067 = vpop.f32.mrb[0].mxu0
    %1068 = vdwg.mxu0
    %1069 = vst [vmem:[#allocation10] sm:$0xff] %v1064
    // Predicated region
    $region46: #{tpu_custom_call.1} parent=1 // pred_check
      _
    $region47: #{tpu_custom_call.1} parent=1 // pred_check_branch
      %1071 = sbr.rel (0) target = $region49
    $region48: #{tpu_custom_call.1} parent=1 // pred_region
      %s1073 = ssub.s32 128, 128
      %1074 = vsyncadd [#allocation4], %s1073
      %s1076 = sshll.u32 [#allocation10], 4
      %s1077 = int_to_ptr.vmem [resolvable:$true] %s1076
      %1079 = dma.vmem_to_hbm [thread:$0]  %s1077, 128, %s7, [#allocation4]
    $region49: #{tpu_custom_call.1} parent=1 // pred_fallthru
      _
    // Predicated region
    $region50: #{tpu_custom_call.1} parent=1 // pred_check
      _
    $region51: #{tpu_custom_call.1} parent=1 // pred_check_branch
      %1081 = sbr.rel (0) target = $region53
    $region52: #{tpu_custom_call.1} parent=1 // pred_region
      %1082 = dma.done [#allocation4], 128
    $region53: #{tpu_custom_call.1} parent=1 // pred_fallthru
      _
    %1083 = vsyncpa [#allocation3], 1
    %1084 = vsyncpa [#allocation6], 1
    %1085 = vsyncpa [#allocation9], 1
    %1086 = vsyncpa [#allocation4], 1

</llo_original>
